<compile_context>
chip_gen: v7x
topology: tpu7x:2x2x1
jax: 0.10.0
libtpu: 0.0.40
codegen_flags: <defaults>
</compile_context>

<pallas_src>
from functools import partial

import jax
import jax.numpy as jnp
from jax.experimental import pallas as pl
from jax.experimental.pallas import tpu as pltpu


# ---------------------------------------------------------------------------
# VMEM budget, generation-gated (v5e/v6e: 128 MiB VMEM, v7x: 64 MiB per TC).
# ---------------------------------------------------------------------------
_VMEM_CFG = None


def _vmem_config():
    """Returns (tile_budget_bytes, vmem_limit_bytes)."""
    global _VMEM_CFG
    if _VMEM_CFG is None:
        vmem_bytes = 64 << 20                      # conservative default (v7x-sized)
        try:
            vmem_bytes = int(pltpu.get_tpu_info().vmem_capacity_bytes)
        except Exception:
            pass
        if vmem_bytes >= (100 << 20):              # v5e / v6e: 128 MiB VMEM
            _VMEM_CFG = (40 << 20, 96 << 20)
        else:                                      # v7x: 64 MiB VMEM per TC
            _VMEM_CFG = (18 << 20, 40 << 20)
    return _VMEM_CFG


def _pick_hw_tile(HW, rows_in, rows_out, itemsize, budget_bytes):
    """Largest lane-dense (multiple-of-128) HW tile whose double-buffered
    input+output blocks stay under budget_bytes.  The last tile may be ragged
    (grid uses pl.cdiv).  Aims for >= 2 tiles so v7x's two TensorCores both
    get work on this bandwidth-bound copy."""
    if HW <= 128:
        return HW                                  # full-extent block (always legal)
    per_lane = 2 * (rows_in + rows_out) * itemsize   # 2 bufs x (in + out) per lane
    t_cap = max(128, (budget_bytes // per_lane) // 128 * 128)
    t_half = max(128, pl.cdiv(HW, 2 * 128) * 128)    # ~half the rounded-up extent
    return int(min(t_cap, t_half))


# ---------------------------------------------------------------------------
# Broadcast + concat kernel (pure data movement; HBM-bandwidth bound).
# ---------------------------------------------------------------------------
def _bcast_concat_kernel(e_ref, x_ref, o_ref, *, B, C, out_f):
    """One grid step == one lane-dense HW tile, all batches at once.

    e_ref: (B*out_f, 1)        per-batch embedding columns, already x.dtype
    x_ref: (B*C, T)            input tile, batch packed into the sublane axis
    o_ref: (B*(C+out_f), T)    output tile
    """
    T = x_ref.shape[-1]
    x_all = x_ref[...]
    e_all = e_ref[...]
    pieces = []
    for b in range(B):                              # B is a static Python int
        pieces.append(x_all[b * C:(b + 1) * C, :])
        e_b = e_all[b * out_f:(b + 1) * out_f, :]   # (out_f, 1), already o dtype
        pieces.append(jnp.broadcast_to(e_b, (out_f, T)))
    # Single full-block store: no per-row masked vst / read-modify-write.
    o_ref[...] = jnp.concatenate(pieces, axis=0)


# ---------------------------------------------------------------------------
# ConditioningBlock forward.
# ---------------------------------------------------------------------------
def conditioning_block(x, l, w1, b1, w2, b2):
    """x: (B, C, H, W) (or non-4D), l: (B, 6).  PyTorch nn.Linear layouts:
    w1: (hidden, 6), b1: (hidden,), w2: (out, hidden), b2: (out,).
    Returns concat along the channel/feature axis, dtype of x for the 4D path."""
    f32 = jnp.float32
    # Tiny 6 -> hidden -> out MLP: plain jnp; XLA fuses it, no Pallas launch.
    h = l.astype(f32) @ w1.astype(f32).T + b1.astype(f32)
    h = jax.nn.gelu(h, approximate=False)          # exact (erf) GELU == nn.GELU()
    e = h @ w2.astype(f32).T + b2.astype(f32)      # (B, out_f)

    if x.ndim != 4:
        # Non-4D path of ConditioningBlock is a plain feature concat; pure data
        # movement, left to XLA rather than a kernel.
        return jnp.concatenate((x, e.astype(x.dtype)), axis=1)

    B, C, H, W = x.shape
    out_f = e.shape[1]
    HW = H * W
    rows_in = B * C
    rows_e = B * out_f
    rows_out = B * (C + out_f)

    # Embedding as one column per batch, pre-cast to the output dtype so the
    # kernel never converts a full tile on the store path.
    e_col = e.astype(x.dtype).reshape(rows_e, 1)   # (B*out_f, 1)

    x_flat = x.reshape(rows_in, HW)                # batch packed into sublanes

    budget, vmem_limit = _vmem_config()
    T_HW = _pick_hw_tile(HW, rows_in, rows_out, jnp.dtype(x.dtype).itemsize, budget)
    n_hw = pl.cdiv(HW, T_HW)

    out_flat = pl.pallas_call(
        partial(_bcast_concat_kernel, B=B, C=C, out_f=out_f),
        out_shape=jax.ShapeDtypeStruct((rows_out, HW), x.dtype),
        grid=(n_hw,),
        in_specs=[
            pl.BlockSpec((rows_e, 1), lambda j: (0, 0)),      # embedding, resident
            pl.BlockSpec((rows_in, T_HW), lambda j: (0, j)),  # x tile
        ],
        out_specs=pl.BlockSpec((rows_out, T_HW), lambda j: (0, j)),
        compiler_params=pltpu.CompilerParams(
            dimension_semantics=("parallel",),
            vmem_limit_bytes=vmem_limit),
    )(e_col, x_flat)

    return out_flat.reshape(B, C + out_f, H, W)


def _reference(x, l, w1, b1, w2, b2):
    """Pure-JAX reference mirroring the PyTorch forward (4D path)."""
    h = l @ w1.T + b1
    h = jax.nn.gelu(h, approximate=False)
    e = h @ w2.T + b2                              # (B, out)
    B, C, H, W = x.shape
    e4 = jnp.broadcast_to(e[:, :, None, None], (B, e.shape[1], H, W)).astype(x.dtype)
    return jnp.concatenate((x, e4), axis=1)


if __name__ == "__main__":
    # Matches ResNetCritic.cond1: ConditioningBlock(hidden_features=8, out_features=2).
    B, C, H, W = 2, 4, 16, 16
    hidden_features, out_features, cond_dim = 8, 2, 6

    key = jax.random.PRNGKey(0)
    kx, kl, kw1, kb1, kw2, kb2 = jax.random.split(key, 6)

    x = jax.random.normal(kx, (B, C, H, W), dtype=jnp.float32)
    l = jax.random.normal(kl, (B, cond_dim), dtype=jnp.float32)

    # Deterministic parameter init (PyTorch nn.Linear-style uniform bounds).
    bound1 = 1.0 / (cond_dim ** 0.5)
    w1 = jax.random.uniform(kw1, (hidden_features, cond_dim), jnp.float32, -bound1, bound1)
    b1 = jax.random.uniform(kb1, (hidden_features,), jnp.float32, -bound1, bound1)
    bound2 = 1.0 / (hidden_features ** 0.5)
    w2 = jax.random.uniform(kw2, (out_features, hidden_features), jnp.float32, -bound2, bound2)
    b2 = jax.random.uniform(kb2, (out_features,), jnp.float32, -bound2, bound2)

    fwd = jax.jit(conditioning_block)
    out = jax.block_until_ready(fwd(x, l, w1, b1, w2, b2))

    ref = _reference(x, l, w1, b1, w2, b2)
    assert out.shape == (B, C + out_features, H, W), out.shape
    assert jnp.allclose(out, ref, atol=1e-5, rtol=1e-5), "mismatch vs reference"

    print("KERNEL_OK")
</pallas_src>

<mosaic_0001>
module attributes {stable_mosaic.version = 11 : i64} {
  func.func @_bcast_concat_kernel(%arg0: i32, %arg1: memref<4x1xf32, #tpu.memory_space<vmem>>, %arg2: memref<8x128xf32, #tpu.memory_space<vmem>>, %arg3: memref<12x128xf32, #tpu.memory_space<vmem>>) attributes {dimension_semantics = [#tpu.dimension_semantics<parallel>], iteration_bounds = array<i64: 2>, scalar_prefetch = 0 : i64, scratch_operands = 0 : i64, tpu.core_type = #tpu.core_type<tc>, window_params = [{pipeline_mode = #tpu.pipeline_mode<synchronous>, transform_indices = @transform_0, window_bounds = array<i64: 4, 1>}, {transform_indices = @transform_1, window_bounds = array<i64: 8, 128>}, {transform_indices = @transform_2, window_bounds = array<i64: 12, 128>}]} {
    %c0 = arith.constant 0 : index
    %c0_0 = arith.constant 0 : index
    %0 = vector.load %arg2[%c0, %c0_0] : memref<8x128xf32, #tpu.memory_space<vmem>>, vector<8x128xf32>
    %c0_1 = arith.constant 0 : index
    %c0_2 = arith.constant 0 : index
    %1 = vector.load %arg1[%c0_1, %c0_2] : memref<4x1xf32, #tpu.memory_space<vmem>>, vector<4x1xf32>
    %2 = vector.extract_strided_slice %0 {offsets = [0, 0], sizes = [4, 128], strides = [1, 1]} : vector<8x128xf32> to vector<4x128xf32>
    %3 = vector.extract_strided_slice %1 {offsets = [0, 0], sizes = [2, 1], strides = [1, 1]} : vector<4x1xf32> to vector<2x1xf32>
    %4 = vector.shape_cast %3 : vector<2x1xf32> to vector<2x1xf32>
    %5 = vector.broadcast %4 : vector<2x1xf32> to vector<2x128xf32>
    %6 = vector.extract_strided_slice %0 {offsets = [4, 0], sizes = [4, 128], strides = [1, 1]} : vector<8x128xf32> to vector<4x128xf32>
    %7 = vector.extract_strided_slice %1 {offsets = [2, 0], sizes = [2, 1], strides = [1, 1]} : vector<4x1xf32> to vector<2x1xf32>
    %8 = vector.shape_cast %7 : vector<2x1xf32> to vector<2x1xf32>
    %9 = vector.broadcast %8 : vector<2x1xf32> to vector<2x128xf32>
    %10 = tpu.concatenate %2, %5, %6, %9 in 0 : vector<4x128xf32>, vector<2x128xf32>, vector<4x128xf32>, vector<2x128xf32> -> vector<12x128xf32>
    %c0_3 = arith.constant 0 : index
    %c0_4 = arith.constant 0 : index
    %11 = vector.load %arg3[%c0_3, %c0_4] : memref<12x128xf32, #tpu.memory_space<vmem>>, vector<12x128xf32>
    tpu.vector_store %arg3[%c0_3, %c0_4], %10 {strides = array<i32>} : memref<12x128xf32, #tpu.memory_space<vmem>>, vector<12x128xf32>,
    return
  }
  func.func @transform_0(%arg0: i32) -> (i32, i32) {
    %c0_i32 = arith.constant 0 : i32
    %c0_i32_0 = arith.constant 0 : i32
    %c0_i32_1 = arith.constant 0 : i32
    return %c0_i32, %c0_i32_0 : i32, i32
  }
  func.func @transform_1(%arg0: i32) -> (i32, i32) {
    %c0_i32 = arith.constant 0 : i32
    %c0_i32_0 = arith.constant 0 : i32
    return %c0_i32, %arg0 : i32, i32
  }
  func.func @transform_2(%arg0: i32) -> (i32, i32) {
    %c0_i32 = arith.constant 0 : i32
    %c0_i32_0 = arith.constant 0 : i32
    return %c0_i32, %arg0 : i32, i32
  }
}

</mosaic_0001>

<llo_original>
// kernel: conditioning_block.1
$region0: #{conditioning_block.1}
  #allocation0 [shape = 'u32[]', space=smem, size = 0x4, offset = 0x4, fixed_abs, tag = 'smem constant byte address 0x4 - core index']
  #allocation1 [shape = 'u32[144,128]{1,0:T(1,128)}', space=vmem, size = 0x12000, scoped, tag = 'internal scratch']
  %s0 = inlined_call_operand.vmem [shape: f32[4,1], index: 0, kind: input, shape index: {}]
  %s1 = inlined_call_operand.vmem [shape: f32[8,256], index: 1, kind: input, shape index: {}]
  %s2 = inlined_call_operand.vmem [shape: f32[12,256], index: 2, kind: output, shape index: {}]
  %s3 = sld [smem:[#allocation0]]
  $region75: #{conditioning_block.1} parent=0
    _
  %s5 = ssub.s32 1, %s3
  %s6 = scalar_select 0, %s5, %s3
  $region1: #{conditioning_block.1} parent=0
    #allocation2 [shape = 'u8[16384]{0}', space=vmem, size = 0x4000, scoped, tag = 'output window, operand 0']
    loop: start=0, step=1, limit=4
    $region2: #{conditioning_block.1} parent=1 // loop_pre_header
      _
    $region3: #{conditioning_block.1} parent=1 // loop_header
      %s8 = sphi 0, %s12
      %p9 = scmp.ge.s32.totalorder %s8, 4
      %s16 = sphi 0, %s16
      %s18 = sphi 0, %s16
      %s19 = sphi 0, %s18
      %s33 = sphi 0, %s19
      %s39 = sphi 0, %s41
      %s42 = sphi 0, %s39
      %s43 = sphi 0, %s42
      %s59 = sphi 0, %s43
      %s65 = sphi 0, %s67
      %s68 = sphi 0, %s65
      %s69 = sphi 0, %s68
      %s85 = sphi 0, %s69
    $region4: #{conditioning_block.1} parent=1 // loop_header_branch
      %11 = sbr.rel (%p9) target = $region8
    $region5: #{conditioning_block.1} parent=1 // loop_body
      %s13 = ssub.s32 %s8, 1
      %s14 = ssub.s32 %s8, 2
      %s15 = sadd.s32 %s8, 1
      %s17 = sadd.s32 %s16, 1
      %p20 = scmp.eq.s32.totalorder %s8, 1
      %p21 = scmp.ne.s32.totalorder %s16, %s18
      %p22 = scmp.eq.s32.totalorder %s8, 0
      %p23 = por %p21, %p22
      %p24 = scmp.ne.s32.totalorder %s16, %s18
      %p25 = scmp.eq.s32.totalorder %s13, 1
      %p26 = por %p24, %p25
      %p27 = scmp.ne.s32.totalorder %s18, %s19
      %p28 = scmp.eq.s32.totalorder %s13, 0
      %p29 = por %p27, %p28
      %p30 = scmp.ne.s32.totalorder %s18, %s19
      %p31 = scmp.eq.s32.totalorder %s14, 1
      %p32 = por %p30, %p31
      %p34 = scmp.ne.s32.totalorder %s19, %s33
      %p35 = scmp.eq.s32.totalorder %s14, 0
      %p36 = por %p34, %p35
      %s37 = ssub.s32 %s8, %s15
      %p38 = scmp.eq.s32.totalorder %s37, 0
      %s40 = sadd.s32 %s39, 1
      %s41 = scalar_select %p38, %s39, %s40
      %p44 = pneg %p38
      %p45 = scmp.eq.s32.totalorder %s8, 1
      %p46 = por %p44, %p45
      %p47 = scmp.ne.s32.totalorder %s39, %s42
      %p48 = scmp.eq.s32.totalorder %s8, 0
      %p49 = por %p47, %p48
      %p50 = scmp.ne.s32.totalorder %s39, %s42
      %p51 = scmp.eq.s32.totalorder %s13, 1
      %p52 = por %p50, %p51
      %p53 = scmp.ne.s32.totalorder %s42, %s43
      %p54 = scmp.eq.s32.totalorder %s13, 0
      %p55 = por %p53, %p54
      %p56 = scmp.ne.s32.totalorder %s42, %s43
      %p57 = scmp.eq.s32.totalorder %s14, 1
      %p58 = por %p56, %p57
      %p60 = scmp.ne.s32.totalorder %s43, %s59
      %p61 = scmp.eq.s32.totalorder %s14, 0
      %p62 = por %p60, %p61
      %s63 = ssub.s32 %s8, %s15
      %p64 = scmp.eq.s32.totalorder %s63, 0
      %s66 = sadd.s32 %s65, 1
      %s67 = scalar_select %p64, %s65, %s66
      %p70 = pneg %p64
      %p71 = scmp.eq.s32.totalorder %s8, 1
      %p72 = por %p70, %p71
      %p73 = scmp.ne.s32.totalorder %s65, %s68
      %p74 = scmp.eq.s32.totalorder %s8, 0
      %p75 = por %p73, %p74
      %p76 = scmp.ne.s32.totalorder %s65, %s68
      %p77 = scmp.eq.s32.totalorder %s13, 1
      %p78 = por %p76, %p77
      %p79 = scmp.ne.s32.totalorder %s68, %s69
      %p80 = scmp.eq.s32.totalorder %s13, 0
      %p81 = por %p79, %p80
      %p82 = scmp.ne.s32.totalorder %s68, %s69
      %p83 = scmp.eq.s32.totalorder %s14, 1
      %p84 = por %p82, %p83
      %p86 = scmp.ne.s32.totalorder %s69, %s85
      %p87 = scmp.eq.s32.totalorder %s14, 0
      %p88 = por %p86, %p87
      %p89 = scmp.le.s32.totalorder 1, %s8
      %p90 = scmp.lt.s32.totalorder %s8, 3
      %p91 = pnand %p89, %p90
      %p92 = pneg %p91
      // Predicated region
      $region9: #{conditioning_block.1} parent=5 // pred_check
        _
      $region10: #{conditioning_block.1} parent=5 // pred_check_branch
        %94 = sbr.rel (%p91) target = $region12
      $region11: #{conditioning_block.1} parent=5 // pred_region
        %s95 = ssub.s32 %s8, 1
        // Predicated region
        $region13: #{conditioning_block.1} parent=11 // pred_check
          %p96 = pneg %p29
        $region14: #{conditioning_block.1} parent=11 // pred_check_branch
          %98 = sbr.rel (%p96) target = $region16
        $region15: #{conditioning_block.1} parent=11 // pred_region
          _
        $region16: #{conditioning_block.1} parent=11 // pred_fallthru
          _
      $region12: #{conditioning_block.1} parent=5 // pred_fallthru
        _
      %p99 = scmp.lt.s32.totalorder %s8, 2
      // Predicated region
      $region17: #{conditioning_block.1} parent=5 // pred_check
        %p100 = pneg %p99
      $region18: #{conditioning_block.1} parent=5 // pred_check_branch
        %102 = sbr.rel (%p100) target = $region20
      $region19: #{conditioning_block.1} parent=5 // pred_region
        // Predicated region
        $region21: #{conditioning_block.1} parent=19 // pred_check
          %p103 = pneg %p49
        $region22: #{conditioning_block.1} parent=19 // pred_check_branch
          %105 = sbr.rel (%p103) target = $region24
        $region23: #{conditioning_block.1} parent=19 // pred_region
          %p106 = scmp.lt.s32.totalorder %s8, 1
          %s107 = scalar_select %p106, %s8, 1
          %s108 = smul.addr %s107, 8
          %s109 = scalar_lea.vmem %s1, %s108
        $region24: #{conditioning_block.1} parent=19 // pred_fallthru
          _
      $region20: #{conditioning_block.1} parent=5 // pred_fallthru
        _
      %p110 = scmp.le.s32.totalorder 1, %s8
      %p111 = scmp.lt.s32.totalorder %s8, 3
      %p112 = pnand %p110, %p111
      %p113 = pneg %p112
      // Predicated region
      $region25: #{conditioning_block.1} parent=5 // pred_check
        _
      $region26: #{conditioning_block.1} parent=5 // pred_check_branch
        %115 = sbr.rel (%p112) target = $region28
      $region27: #{conditioning_block.1} parent=5 // pred_region
        %s116 = ssub.s32 %s8, 1
        %p117 = pneg %p29
        %p118 = pneg %p26
        %p119 = scmp.lt.s32.totalorder %s13, 1
        %s120 = scalar_select %p119, %s13, 1
        %s121 = smul.addr %s120, 8
        %s122 = scalar_lea.vmem %s1, %s121
        %p123 = pneg %p55
        %p124 = pneg %p52
        %p125 = pneg %p81
        %p126 = pneg %p78
        %s127 = sand.u32 %s68, 1
        %s128 = sand.u32 %s68, 1
        %s129 = smul.addr %s128, 16
        %s130 = scalar_lea.vmem [#allocation2], %s129
        %p131 = scmp.lt.s32.totalorder %s13, 1
        %s132 = scalar_select %p131, %s13, 1
        %s133 = smul.addr %s132, 8
        %s134 = scalar_lea.vmem %s1, %s133
        %v135 = vld [vmem:[%s134] sm:$0xff]
        %v136 = vld [vmem:[%s0] sm:$0xf]
        %138 = vset.pattern.permute.xlu0 0
        %139 = vperm.xlu0 %138, %v136
        %v140 = vpop.permute.xlu0 %139
        %v142 = vrot.slane %v140, 4
        %v145 = vrot.slane %v135, 6
        %vm147 = vcmask 1043456
        %v148 = vsel %vm147, %v135, %v142
        %vm149 = vcmask 1045504
        %v150 = vsel %vm149, %v148, %v145
        %vm151 = vcmask 1041408
        %v152 = vsel %vm151, %v145, %v140
        %153 = vst [vmem:[%s130] sm:$0xff] %v150
        %154 = vst [vmem:[%s130 + $0x8] sm:$0xf] %v152
        %s155 = sand.u32 %s68, 1
        %s156 = sand.u32 %s68, 1
        %s157 = smul.addr %s156, 16
        %s158 = scalar_lea.vmem [#allocation2], %s157
        // Predicated region
        $region29: #{conditioning_block.1} parent=27 // pred_check
          %p159 = pneg %p78
        $region30: #{conditioning_block.1} parent=27 // pred_check_branch
          %161 = sbr.rel (%p159) target = $region32
        $region31: #{conditioning_block.1} parent=27 // pred_region
          %s162 = smul.addr %s13, 8
          %s163 = scalar_lea.vmem %s2, %s162
          // Predicated region
          $region33: #{conditioning_block.1} parent=31 // pred_check
            _
          $region34: #{conditioning_block.1} parent=31 // pred_check_branch
            %165 = sbr.rel (0) target = $region36
          $region35: #{conditioning_block.1} parent=31 // pred_region
            // Predicated region
            $region37: #{conditioning_block.1} parent=35 // pred_check
              _
            $region38: #{conditioning_block.1} parent=35 // pred_check_branch
              %167 = sbr.rel (0) target = $region40
            $region39: #{conditioning_block.1} parent=35 // pred_region
              // Predicated region
              $region52: #{conditioning_block.1} parent=39 // pred_check
                _
              $region53: #{conditioning_block.1} parent=39 // pred_check_branch
                %184 = sbr.rel (0) target = $region55
              $region54: #{conditioning_block.1} parent=39 // pred_region
                loop: start=0, step=1, limit=1
                $region56: #{conditioning_block.1} parent=54 // loop_pre_header
                  _
                $region57: #{conditioning_block.1} parent=54 // loop_header
                  %s186 = sphi 0, %s190
                  %p187 = scmp.ge.s32.totalorder %s186, 1
                  %s191 = sphi %s158, %s158
                  %s192 = sphi %s163, %s163
                $region58: #{conditioning_block.1} parent=54 // loop_header_branch
                  %189 = sbr.rel (%p187) target = $region62
                $region59: #{conditioning_block.1} parent=54 // loop_body
                  %v193 = vld [vmem:[%s191] sm:$0xff]
                  %194 = vst [vmem:[%s192] sm:$0xff] %v193
                  %v195 = vld [vmem:[%s191 + $0x8] sm:$0xff]
                  %196 = vst [vmem:[%s192 + $0x10] sm:$0xff] %v195
                $region60: #{conditioning_block.1} parent=54 // loop_footer
                  %s190 = sadd.s32 1, %s186
                $region61: #{conditioning_block.1} parent=54 // loop_footer_branch
                  %185 = sbr.rel target = $region57
                $region62: #{conditioning_block.1} parent=54 // loop_exit
                  _
              $region55: #{conditioning_block.1} parent=39 // pred_fallthru
                _
              // Predicated region
              $region63: #{conditioning_block.1} parent=39 // pred_check
                _
              $region64: #{conditioning_block.1} parent=39 // pred_check_branch
                %198 = sbr.rel target = $region66
              $region65: #{conditioning_block.1} parent=39 // pred_region
                _
              $region66: #{conditioning_block.1} parent=39 // pred_fallthru
                _
            $region40: #{conditioning_block.1} parent=35 // pred_fallthru
              _
            // Predicated region
            $region41: #{conditioning_block.1} parent=35 // pred_check
              _
            $region42: #{conditioning_block.1} parent=35 // pred_check_branch
              %169 = sbr.rel target = $region44
            $region43: #{conditioning_block.1} parent=35 // pred_region
              loop: start=0, step=1, limit=1
              $region45: #{conditioning_block.1} parent=43 // loop_pre_header
                _
              $region46: #{conditioning_block.1} parent=43 // loop_header
                %s172 = sphi 0, %s176
                %p173 = scmp.ge.s32.totalorder %s172, 1
                %s177 = sphi %s158, %s158
                %s178 = sphi %s163, %s163
              $region47: #{conditioning_block.1} parent=43 // loop_header_branch
                %175 = sbr.rel (%p173) target = $region51
              $region48: #{conditioning_block.1} parent=43 // loop_body
                %v179 = vld [vmem:[%s177] sm:$0xff]
                %180 = vst [vmem:[%s178] sm:$0xff] %v179
                %v181 = vld [vmem:[%s177 + $0x8] sm:$0xff]
                %182 = vst [vmem:[%s178 + $0x10] sm:$0xff] %v181
              $region49: #{conditioning_block.1} parent=43 // loop_footer
                %s176 = sadd.s32 1, %s172
              $region50: #{conditioning_block.1} parent=43 // loop_footer_branch
                %171 = sbr.rel target = $region46
              $region51: #{conditioning_block.1} parent=43 // loop_exit
                _
            $region44: #{conditioning_block.1} parent=35 // pred_fallthru
              _
          $region36: #{conditioning_block.1} parent=31 // pred_fallthru
            _
          %199 = vnop
        $region32: #{conditioning_block.1} parent=27 // pred_fallthru
          _
      $region28: #{conditioning_block.1} parent=5 // pred_fallthru
        _
      %p200 = scmp.le.s32.totalorder 2, %s8
      // Predicated region
      $region67: #{conditioning_block.1} parent=5 // pred_check
        %p201 = pneg %p200
      $region68: #{conditioning_block.1} parent=5 // pred_check_branch
        %203 = sbr.rel (%p201) target = $region70
      $region69: #{conditioning_block.1} parent=5 // pred_region
        %s204 = ssub.s32 %s8, 2
        // Predicated region
        $region71: #{conditioning_block.1} parent=69 // pred_check
          %p205 = pneg %p84
        $region72: #{conditioning_block.1} parent=69 // pred_check_branch
          %207 = sbr.rel (%p205) target = $region74
        $region73: #{conditioning_block.1} parent=69 // pred_region
          %s208 = sand.u32 %s69, 1
          %s209 = sand.u32 %s69, 1
          %s210 = smul.addr %s209, 16
          %s211 = scalar_lea.vmem [#allocation2], %s210
        $region74: #{conditioning_block.1} parent=69 // pred_fallthru
          _
      $region70: #{conditioning_block.1} parent=5 // pred_fallthru
        _
    $region6: #{conditioning_block.1} parent=1 // loop_footer
      %s12 = sadd.s32 1, %s8
    $region7: #{conditioning_block.1} parent=1 // loop_footer_branch
      %7 = sbr.rel target = $region3
    $region8: #{conditioning_block.1} parent=1 // loop_exit
      _

</llo_original>
